<compile_context>
chip_gen: v6e
topology: v6e:2x2x1
jax: 0.10.0
libtpu: 0.0.40
codegen_flags: <defaults>
</compile_context>

<pallas_src>
import functools

import jax
import jax.numpy as jnp
from jax.experimental import pallas as pl
from jax.experimental.pallas import tpu as pltpu


def _round_up(x, m):
    return (x + m - 1) // m * m


# ---------------------------------------------------------------------------
# Portable in-kernel dropout (counter-based hash; no pltpu.prng_* primitives).
# ---------------------------------------------------------------------------
def _uniform_u32(shape, seed_u32, base_row, ncols):
    """One well-mixed uint32 per element, keyed on (seed, global element id)."""
    rows = jax.lax.broadcasted_iota(jnp.uint32, shape, 0)
    cols = jax.lax.broadcasted_iota(jnp.uint32, shape, 1)
    rows = rows + base_row.astype(jnp.uint32)
    x = rows * jnp.uint32(ncols) + cols
    x = x ^ (seed_u32 * jnp.uint32(0x9E3779B9))
    x = x * jnp.uint32(0x85EBCA6B)
    x = x ^ (x >> 16)
    x = x * jnp.uint32(0xC2B2AE35)
    x = x ^ (x >> 13)
    x = x * jnp.uint32(0x27D4EB2F)
    x = x ^ (x >> 16)
    return x


def _dropout(x, p, seed_i32, base_row, ncols):
    """Inverted dropout; p is a static float, seed a runtime SMEM scalar.

    Stochastic — matches F.dropout(training=True) semantics, not torch's RNG
    stream.  Element indexing is global, so the mask is tiling-invariant.
    """
    bits = _uniform_u32(x.shape, seed_i32.astype(jnp.uint32), base_row, ncols)
    thresh = jnp.uint32(min(int(p * (2.0 ** 32)), 2 ** 32 - 1))
    inv_keep = 1.0 / (1.0 - p)
    return x * jnp.where(bits >= thresh, inv_keep, 0.0).astype(x.dtype)


# ---------------------------------------------------------------------------
# Kernels
# ---------------------------------------------------------------------------
def _gather_kernel(ids_ref, seed_ref, w_hbm, out_ref, rows, sems,
                   *, T, ninp, p, training):
    """One grid step = T tokens.  T row DMAs (HBM -> VMEM) kept in flight,
    then fused dropout over the whole (T, ninp) block."""
    if training and p >= 1.0:
        # Output is identically zero: skip the row DMAs entirely.
        out_ref[...] = jnp.zeros_like(out_ref)
        return

    blk = pl.program_id(0)
    base = blk * T

    copies = []
    for t in range(T):                       # T is a small static constant
        tok = ids_ref[base + t]              # SMEM scalar read
        cp = pltpu.make_async_copy(
            w_hbm.at[pl.ds(tok, 1), :],      # dynamic row of the HBM table
            rows.at[pl.ds(t, 1), :],
            sems.at[t])
        cp.start()
        copies.append(cp)
    for cp in copies:
        cp.wait()

    block = rows[...]                        # (T, ninp) f32
    if training and p > 0.0:
        block = _dropout(block, p, seed_ref[0], base_row=base, ncols=ninp)
    out_ref[...] = block.astype(out_ref.dtype)


def _onehot_kernel(seed_ref, x_ref, w_ref, out_ref, acc_ref,
                   *, p, training, ninp, tb):
    """(tb, tk) x (tk, ninp) K-tiled matmul with an f32 VMEM accumulator.
    W's block index does not depend on the batch axis, so the table is not
    re-fetched per batch tile."""
    i = pl.program_id(0)
    k = pl.program_id(1)

    @pl.when(k == 0)
    def _():
        acc_ref[...] = jnp.zeros_like(acc_ref)

    acc_ref[...] += jnp.dot(x_ref[...], w_ref[...],
                            preferred_element_type=jnp.float32)

    @pl.when(k == pl.num_programs(1) - 1)
    def _():
        out = acc_ref[...]
        if training and p >= 1.0:
            out = jnp.zeros_like(out)
        elif training and p > 0.0:
            out = _dropout(out, p, seed_ref[0], base_row=i * tb, ncols=ninp)
        out_ref[...] = out.astype(out_ref.dtype)


# ---------------------------------------------------------------------------
# Module wrapper
# ---------------------------------------------------------------------------
class NetW:
    """JAX/Pallas port of _netW (embedding + shared-weight linear + dropout)."""

    def __init__(self, ntoken, ninp, dropout, key,
                 *, max_k_tile=2048, max_b_tile=256, gather_block=8):
        self.vocab = ntoken + 1
        self.ninp = ninp
        self.d = float(dropout)
        self.gather_block = gather_block      # T tokens per gather grid step
        self.max_b_tile = max_b_tile

        initrange = 0.1                       # word_embed.weight.uniform_(-0.1, 0.1)
        self.weight = jax.random.uniform(
            key, (self.vocab, ninp), jnp.float32, -initrange, initrange)

        # Single weight table shared by both paths.  Only the vocab dim is
        # padded (to a multiple of the onehot K-tile); the last dim stays the
        # true ninp so output writeback is not inflated for small embeddings.
        self.k_tile = min(max_k_tile, _round_up(self.vocab, 128))
        self.vocab_pad = _round_up(self.vocab, self.k_tile)
        self._w = (jnp.zeros((self.vocab_pad, ninp), jnp.float32)
                   .at[: self.vocab].set(self.weight))

        # TODO(synk): init_hidden in the original module references undefined
        # attributes (rnn_type / nlayers / nhid); dead code, not ported.

    def __call__(self, inp, format="index", training=False, seed=0):
        seed_arr = jnp.asarray([seed], dtype=jnp.int32)

        if format == "index":
            # Clip defensively: PyTorch would raise on out-of-range ids; here
            # they silently read the last valid row.
            ids = jnp.clip(inp.reshape(-1).astype(jnp.int32), 0, self.vocab - 1)
            n = ids.shape[0]
            T = self.gather_block
            n_pad = _round_up(max(n, 1), T)
            ids_pad = jnp.zeros((n_pad,), jnp.int32).at[:n].set(ids)

            kernel = functools.partial(
                _gather_kernel, T=T, ninp=self.ninp, p=self.d, training=training)
            out = pl.pallas_call(
                kernel,
                out_shape=jax.ShapeDtypeStruct((n_pad, self.ninp), jnp.float32),
                grid_spec=pltpu.PrefetchScalarGridSpec(
                    num_scalar_prefetch=2,          # (ids, seed) -> SMEM
                    grid=(n_pad // T,),
                    in_specs=[
                        pl.BlockSpec(memory_space=pl.ANY),   # weight stays in HBM
                    ],
                    out_specs=pl.BlockSpec(
                        (T, self.ninp), lambda i, ids_ref, seed_ref: (i, 0)),
                    scratch_shapes=[
                        pltpu.VMEM((T, self.ninp), jnp.float32),
                        pltpu.SemaphoreType.DMA((T,)),
                    ],
                ),
                compiler_params=pltpu.CompilerParams(
                    dimension_semantics=("parallel",),
                    vmem_limit_bytes=32 * 1024 * 1024),
            )(ids_pad, seed_arr, self._w)
            return out[:n].reshape(inp.shape + (self.ninp,))

        elif format == "onehot":
            x = inp.astype(jnp.float32)
            assert x.ndim == 2 and x.shape[1] == self.vocab
            b = x.shape[0]
            tb = min(self.max_b_tile, _round_up(b, 8))
            b_pad = _round_up(b, tb)
            tk = self.k_tile
            # Pad batch to tb and vocab to the weight table's padded rows
            # (zero padding contributes exactly zero to the matmul).
            x_pad = (jnp.zeros((b_pad, self.vocab_pad), jnp.float32)
                     .at[:b, : self.vocab].set(x))

            kernel = functools.partial(
                _onehot_kernel, p=self.d, training=training,
                ninp=self.ninp, tb=tb)
            out = pl.pallas_call(
                kernel,
                out_shape=jax.ShapeDtypeStruct((b_pad, self.ninp), jnp.float32),
                grid_spec=pltpu.PrefetchScalarGridSpec(
                    num_scalar_prefetch=1,          # seed -> SMEM
                    grid=(b_pad // tb, self.vocab_pad // tk),
                    in_specs=[
                        pl.BlockSpec((tb, tk), lambda i, k, seed: (i, k)),
                        # W block does not depend on i -> not re-streamed per
                        # batch tile (and loaded once when the K axis is 1).
                        pl.BlockSpec((tk, self.ninp), lambda i, k, seed: (k, 0)),
                    ],
                    out_specs=pl.BlockSpec((tb, self.ninp),
                                           lambda i, k, seed: (i, 0)),
                    scratch_shapes=[pltpu.VMEM((tb, self.ninp), jnp.float32)],
                ),
                compiler_params=pltpu.CompilerParams(
                    dimension_semantics=("parallel", "arbitrary"),
                    vmem_limit_bytes=64 * 1024 * 1024),
            )(seed_arr, x_pad, self._w)
            return out[:b]

        else:
            raise ValueError(f"unknown format: {format}")


if __name__ == "__main__":
    key = jax.random.PRNGKey(0)
    kw, ki, ko, kw2, ki2, ko2 = jax.random.split(key, 6)

    ntoken, ninp, dropout = 15, 32, 0.5          # vocab = ntoken + 1 = 16
    batch, seq = 2, 8

    net = NetW(ntoken, ninp, dropout, kw)

    # ---- format='index': (batch, seq) token ids -> (batch, seq, ninp) ----
    ids = jax.random.randint(ki, (batch, seq), 0, ntoken + 1, dtype=jnp.int32)
    out_idx = net(ids, format="index", training=False)
    jax.block_until_ready(out_idx)
    ref_idx = net.weight[ids]
    assert out_idx.shape == (batch, seq, ninp)
    assert jnp.allclose(out_idx, ref_idx, atol=1e-6), "index path mismatch"

    # ---- format='onehot': (batch, vocab) one-hot -> (batch, ninp) ----
    oh_ids = jax.random.randint(ko, (batch,), 0, ntoken + 1, dtype=jnp.int32)
    onehot = jax.nn.one_hot(oh_ids, ntoken + 1, dtype=jnp.float32)
    out_oh = net(onehot, format="onehot", training=False)
    jax.block_until_ready(out_oh)
    ref_oh = onehot @ net.weight
    assert out_oh.shape == (batch, ninp)
    assert jnp.allclose(out_oh, ref_oh, atol=1e-6), "onehot path mismatch"

    # ---- larger-vocab config: forces >1 K-step (accumulator path) and >1
    #      gather block, to exercise the general tiling. ----
    net2 = NetW(255, ninp, dropout, kw2, max_k_tile=128)
    ids2 = jax.random.randint(ki2, (3, 7), 0, 256, dtype=jnp.int32)
    out2 = net2(ids2, format="index", training=False)
    oh2_ids = jax.random.randint(ko2, (5,), 0, 256, dtype=jnp.int32)
    oh2 = jax.nn.one_hot(oh2_ids, 256, dtype=jnp.float32)
    out_oh2 = net2(oh2, format="onehot", training=False)
    jax.block_until_ready((out2, out_oh2))
    assert jnp.allclose(out2, net2.weight[ids2], atol=1e-6), "index path (big) mismatch"
    assert jnp.allclose(out_oh2, oh2 @ net2.weight, atol=1e-6), "onehot path (big) mismatch"

    # ---- training=True: fused in-kernel dropout (stochastic, sanity only) ----
    out_tr = net(ids, format="index", training=True, seed=123)
    out_tr_oh = net(onehot, format="onehot", training=True, seed=7)
    jax.block_until_ready((out_tr, out_tr_oh))
    assert out_tr.shape == (batch, seq, ninp)
    assert out_tr_oh.shape == (batch, ninp)
    assert bool(jnp.all(jnp.isfinite(out_tr)))
    assert bool(jnp.all(jnp.isfinite(out_tr_oh)))
    # dropped elements are exactly zero; kept elements are scaled copies
    nz = jnp.abs(out_tr) > 0
    assert bool(jnp.any(~nz)) or dropout == 0.0

    print("KERNEL_OK")
</pallas_src>

<mosaic_0001>
module attributes {stable_mosaic.version = 11 : i64} {
  func.func @_gather_kernel(%arg0: i32, %arg1: memref<16xi32, #tpu.memory_space<smem>>, %arg2: memref<1xi32, #tpu.memory_space<smem>>, %arg3: memref<128x32xf32, #tpu.memory_space<any>>, %arg4: memref<8x32xf32, #tpu.memory_space<vmem>>, %arg5: memref<8x32xf32, #tpu.memory_space<vmem>>, %arg6: memref<8x!tpu.dma_semaphore, #tpu.memory_space<semaphore_mem>>) attributes {dimension_semantics = [#tpu.dimension_semantics<parallel>], iteration_bounds = array<i64: 2>, scalar_prefetch = 2 : i64, scratch_operands = 2 : i64, tpu.core_type = #tpu.core_type<tc>, window_params = [{}, {transform_indices = @transform_1, window_bounds = array<i64: 8, 32>}]} {
    %c8_i32 = arith.constant 8 : i32
    %0 = arith.muli %arg0, %c8_i32 : i32
    %c0_i32 = arith.constant 0 : i32
    %1 = arith.addi %0, %c0_i32 : i32
    %2 = arith.index_cast %1 : i32 to index
    %3 = memref.load %arg1[%2] : memref<16xi32, #tpu.memory_space<smem>>
    %c0_i32_0 = arith.constant 0 : i32
    %c0_i32_1 = arith.constant 0 : i32
    %4 = tpu.memref_slice %arg3[%3, %c0_i32_1] : memref<128x32xf32, #tpu.memory_space<any>> -> memref<1x32xf32, #tpu.memory_space<any>>
    %c0_i32_2 = arith.constant 0 : i32
    %c0_i32_3 = arith.constant 0 : i32
    %5 = tpu.memref_slice %arg5[%c0_i32_2, %c0_i32_3] : memref<8x32xf32, #tpu.memory_space<vmem>> -> memref<1x32xf32, #tpu.memory_space<vmem>>
    %6 = tpu.memref_slice %arg6[%c0_i32_0] : memref<8x!tpu.dma_semaphore, #tpu.memory_space<semaphore_mem>> -> memref<1x!tpu.dma_semaphore, #tpu.memory_space<semaphore_mem>>
    %7 = tpu.memref_squeeze %6 : memref<1x!tpu.dma_semaphore, #tpu.memory_space<semaphore_mem>> -> memref<!tpu.dma_semaphore, #tpu.memory_space<semaphore_mem>>
    tpu.enqueue_dma source(%4 : memref<1x32xf32, #tpu.memory_space<any>>) target(%5 : memref<1x32xf32, #tpu.memory_space<vmem>>) target_semaphore(%7 : memref<!tpu.dma_semaphore, #tpu.memory_space<semaphore_mem>>)
    %c1_i32 = arith.constant 1 : i32
    %8 = arith.addi %0, %c1_i32 : i32
    %9 = arith.index_cast %8 : i32 to index
    %10 = memref.load %arg1[%9] : memref<16xi32, #tpu.memory_space<smem>>
    %c1_i32_4 = arith.constant 1 : i32
    %c0_i32_5 = arith.constant 0 : i32
    %11 = tpu.memref_slice %arg3[%10, %c0_i32_5] : memref<128x32xf32, #tpu.memory_space<any>> -> memref<1x32xf32, #tpu.memory_space<any>>
    %c1_i32_6 = arith.constant 1 : i32
    %c0_i32_7 = arith.constant 0 : i32
    %12 = tpu.memref_slice %arg5[%c1_i32_6, %c0_i32_7] : memref<8x32xf32, #tpu.memory_space<vmem>> -> memref<1x32xf32, #tpu.memory_space<vmem>>
    %13 = tpu.memref_slice %arg6[%c1_i32_4] : memref<8x!tpu.dma_semaphore, #tpu.memory_space<semaphore_mem>> -> memref<1x!tpu.dma_semaphore, #tpu.memory_space<semaphore_mem>>
    %14 = tpu.memref_squeeze %13 : memref<1x!tpu.dma_semaphore, #tpu.memory_space<semaphore_mem>> -> memref<!tpu.dma_semaphore, #tpu.memory_space<semaphore_mem>>
    tpu.enqueue_dma source(%11 : memref<1x32xf32, #tpu.memory_space<any>>) target(%12 : memref<1x32xf32, #tpu.memory_space<vmem>>) target_semaphore(%14 : memref<!tpu.dma_semaphore, #tpu.memory_space<semaphore_mem>>)
    %c2_i32 = arith.constant 2 : i32
    %15 = arith.addi %0, %c2_i32 : i32
    %16 = arith.index_cast %15 : i32 to index
    %17 = memref.load %arg1[%16] : memref<16xi32, #tpu.memory_space<smem>>
    %c2_i32_8 = arith.constant 2 : i32
    %c0_i32_9 = arith.constant 0 : i32
    %18 = tpu.memref_slice %arg3[%17, %c0_i32_9] : memref<128x32xf32, #tpu.memory_space<any>> -> memref<1x32xf32, #tpu.memory_space<any>>
    %c2_i32_10 = arith.constant 2 : i32
    %c0_i32_11 = arith.constant 0 : i32
    %19 = tpu.memref_slice %arg5[%c2_i32_10, %c0_i32_11] : memref<8x32xf32, #tpu.memory_space<vmem>> -> memref<1x32xf32, #tpu.memory_space<vmem>>
    %20 = tpu.memref_slice %arg6[%c2_i32_8] : memref<8x!tpu.dma_semaphore, #tpu.memory_space<semaphore_mem>> -> memref<1x!tpu.dma_semaphore, #tpu.memory_space<semaphore_mem>>
    %21 = tpu.memref_squeeze %20 : memref<1x!tpu.dma_semaphore, #tpu.memory_space<semaphore_mem>> -> memref<!tpu.dma_semaphore, #tpu.memory_space<semaphore_mem>>
    tpu.enqueue_dma source(%18 : memref<1x32xf32, #tpu.memory_space<any>>) target(%19 : memref<1x32xf32, #tpu.memory_space<vmem>>) target_semaphore(%21 : memref<!tpu.dma_semaphore, #tpu.memory_space<semaphore_mem>>)
    %c3_i32 = arith.constant 3 : i32
    %22 = arith.addi %0, %c3_i32 : i32
    %23 = arith.index_cast %22 : i32 to index
    %24 = memref.load %arg1[%23] : memref<16xi32, #tpu.memory_space<smem>>
    %c3_i32_12 = arith.constant 3 : i32
    %c0_i32_13 = arith.constant 0 : i32
    %25 = tpu.memref_slice %arg3[%24, %c0_i32_13] : memref<128x32xf32, #tpu.memory_space<any>> -> memref<1x32xf32, #tpu.memory_space<any>>
    %c3_i32_14 = arith.constant 3 : i32
    %c0_i32_15 = arith.constant 0 : i32
    %26 = tpu.memref_slice %arg5[%c3_i32_14, %c0_i32_15] : memref<8x32xf32, #tpu.memory_space<vmem>> -> memref<1x32xf32, #tpu.memory_space<vmem>>
    %27 = tpu.memref_slice %arg6[%c3_i32_12] : memref<8x!tpu.dma_semaphore, #tpu.memory_space<semaphore_mem>> -> memref<1x!tpu.dma_semaphore, #tpu.memory_space<semaphore_mem>>
    %28 = tpu.memref_squeeze %27 : memref<1x!tpu.dma_semaphore, #tpu.memory_space<semaphore_mem>> -> memref<!tpu.dma_semaphore, #tpu.memory_space<semaphore_mem>>
    tpu.enqueue_dma source(%25 : memref<1x32xf32, #tpu.memory_space<any>>) target(%26 : memref<1x32xf32, #tpu.memory_space<vmem>>) target_semaphore(%28 : memref<!tpu.dma_semaphore, #tpu.memory_space<semaphore_mem>>)
    %c4_i32 = arith.constant 4 : i32
    %29 = arith.addi %0, %c4_i32 : i32
    %30 = arith.index_cast %29 : i32 to index
    %31 = memref.load %arg1[%30] : memref<16xi32, #tpu.memory_space<smem>>
    %c4_i32_16 = arith.constant 4 : i32
    %c0_i32_17 = arith.constant 0 : i32
    %32 = tpu.memref_slice %arg3[%31, %c0_i32_17] : memref<128x32xf32, #tpu.memory_space<any>> -> memref<1x32xf32, #tpu.memory_space<any>>
    %c4_i32_18 = arith.constant 4 : i32
    %c0_i32_19 = arith.constant 0 : i32
    %33 = tpu.memref_slice %arg5[%c4_i32_18, %c0_i32_19] : memref<8x32xf32, #tpu.memory_space<vmem>> -> memref<1x32xf32, #tpu.memory_space<vmem>>
    %34 = tpu.memref_slice %arg6[%c4_i32_16] : memref<8x!tpu.dma_semaphore, #tpu.memory_space<semaphore_mem>> -> memref<1x!tpu.dma_semaphore, #tpu.memory_space<semaphore_mem>>
    %35 = tpu.memref_squeeze %34 : memref<1x!tpu.dma_semaphore, #tpu.memory_space<semaphore_mem>> -> memref<!tpu.dma_semaphore, #tpu.memory_space<semaphore_mem>>
    tpu.enqueue_dma source(%32 : memref<1x32xf32, #tpu.memory_space<any>>) target(%33 : memref<1x32xf32, #tpu.memory_space<vmem>>) target_semaphore(%35 : memref<!tpu.dma_semaphore, #tpu.memory_space<semaphore_mem>>)
    %c5_i32 = arith.constant 5 : i32
    %36 = arith.addi %0, %c5_i32 : i32
    %37 = arith.index_cast %36 : i32 to index
    %38 = memref.load %arg1[%37] : memref<16xi32, #tpu.memory_space<smem>>
    %c5_i32_20 = arith.constant 5 : i32
    %c0_i32_21 = arith.constant 0 : i32
    %39 = tpu.memref_slice %arg3[%38, %c0_i32_21] : memref<128x32xf32, #tpu.memory_space<any>> -> memref<1x32xf32, #tpu.memory_space<any>>
    %c5_i32_22 = arith.constant 5 : i32
    %c0_i32_23 = arith.constant 0 : i32
    %40 = tpu.memref_slice %arg5[%c5_i32_22, %c0_i32_23] : memref<8x32xf32, #tpu.memory_space<vmem>> -> memref<1x32xf32, #tpu.memory_space<vmem>>
    %41 = tpu.memref_slice %arg6[%c5_i32_20] : memref<8x!tpu.dma_semaphore, #tpu.memory_space<semaphore_mem>> -> memref<1x!tpu.dma_semaphore, #tpu.memory_space<semaphore_mem>>
    %42 = tpu.memref_squeeze %41 : memref<1x!tpu.dma_semaphore, #tpu.memory_space<semaphore_mem>> -> memref<!tpu.dma_semaphore, #tpu.memory_space<semaphore_mem>>
    tpu.enqueue_dma source(%39 : memref<1x32xf32, #tpu.memory_space<any>>) target(%40 : memref<1x32xf32, #tpu.memory_space<vmem>>) target_semaphore(%42 : memref<!tpu.dma_semaphore, #tpu.memory_space<semaphore_mem>>)
    %c6_i32 = arith.constant 6 : i32
    %43 = arith.addi %0, %c6_i32 : i32
    %44 = arith.index_cast %43 : i32 to index
    %45 = memref.load %arg1[%44] : memref<16xi32, #tpu.memory_space<smem>>
    %c6_i32_24 = arith.constant 6 : i32
    %c0_i32_25 = arith.constant 0 : i32
    %46 = tpu.memref_slice %arg3[%45, %c0_i32_25] : memref<128x32xf32, #tpu.memory_space<any>> -> memref<1x32xf32, #tpu.memory_space<any>>
    %c6_i32_26 = arith.constant 6 : i32
    %c0_i32_27 = arith.constant 0 : i32
    %47 = tpu.memref_slice %arg5[%c6_i32_26, %c0_i32_27] : memref<8x32xf32, #tpu.memory_space<vmem>> -> memref<1x32xf32, #tpu.memory_space<vmem>>
    %48 = tpu.memref_slice %arg6[%c6_i32_24] : memref<8x!tpu.dma_semaphore, #tpu.memory_space<semaphore_mem>> -> memref<1x!tpu.dma_semaphore, #tpu.memory_space<semaphore_mem>>
    %49 = tpu.memref_squeeze %48 : memref<1x!tpu.dma_semaphore, #tpu.memory_space<semaphore_mem>> -> memref<!tpu.dma_semaphore, #tpu.memory_space<semaphore_mem>>
    tpu.enqueue_dma source(%46 : memref<1x32xf32, #tpu.memory_space<any>>) target(%47 : memref<1x32xf32, #tpu.memory_space<vmem>>) target_semaphore(%49 : memref<!tpu.dma_semaphore, #tpu.memory_space<semaphore_mem>>)
    %c7_i32 = arith.constant 7 : i32
    %50 = arith.addi %0, %c7_i32 : i32
    %51 = arith.index_cast %50 : i32 to index
    %52 = memref.load %arg1[%51] : memref<16xi32, #tpu.memory_space<smem>>
    %c7_i32_28 = arith.constant 7 : i32
    %c0_i32_29 = arith.constant 0 : i32
    %53 = tpu.memref_slice %arg3[%52, %c0_i32_29] : memref<128x32xf32, #tpu.memory_space<any>> -> memref<1x32xf32, #tpu.memory_space<any>>
    %c7_i32_30 = arith.constant 7 : i32
    %c0_i32_31 = arith.constant 0 : i32
    %54 = tpu.memref_slice %arg5[%c7_i32_30, %c0_i32_31] : memref<8x32xf32, #tpu.memory_space<vmem>> -> memref<1x32xf32, #tpu.memory_space<vmem>>
    %55 = tpu.memref_slice %arg6[%c7_i32_28] : memref<8x!tpu.dma_semaphore, #tpu.memory_space<semaphore_mem>> -> memref<1x!tpu.dma_semaphore, #tpu.memory_space<semaphore_mem>>
    %56 = tpu.memref_squeeze %55 : memref<1x!tpu.dma_semaphore, #tpu.memory_space<semaphore_mem>> -> memref<!tpu.dma_semaphore, #tpu.memory_space<semaphore_mem>>
    tpu.enqueue_dma source(%53 : memref<1x32xf32, #tpu.memory_space<any>>) target(%54 : memref<1x32xf32, #tpu.memory_space<vmem>>) target_semaphore(%56 : memref<!tpu.dma_semaphore, #tpu.memory_space<semaphore_mem>>)
    %c0_i32_32 = arith.constant 0 : i32
    %c0_i32_33 = arith.constant 0 : i32
    %57 = tpu.memref_slice %arg3[%3, %c0_i32_33] : memref<128x32xf32, #tpu.memory_space<any>> -> memref<1x32xf32, #tpu.memory_space<any>>
    %c0_i32_34 = arith.constant 0 : i32
    %c0_i32_35 = arith.constant 0 : i32
    %58 = tpu.memref_slice %arg5[%c0_i32_34, %c0_i32_35] : memref<8x32xf32, #tpu.memory_space<vmem>> -> memref<1x32xf32, #tpu.memory_space<vmem>>
    %59 = tpu.memref_slice %arg6[%c0_i32_32] : memref<8x!tpu.dma_semaphore, #tpu.memory_space<semaphore_mem>> -> memref<1x!tpu.dma_semaphore, #tpu.memory_space<semaphore_mem>>
    %60 = tpu.memref_squeeze %59 : memref<1x!tpu.dma_semaphore, #tpu.memory_space<semaphore_mem>> -> memref<!tpu.dma_semaphore, #tpu.memory_space<semaphore_mem>>
    tpu.wait_dma2 semaphore(%60 : memref<!tpu.dma_semaphore, #tpu.memory_space<semaphore_mem>>) src(%57 : memref<1x32xf32, #tpu.memory_space<any>>) dst(%58 : memref<1x32xf32, #tpu.memory_space<vmem>>)
    %c1_i32_36 = arith.constant 1 : i32
    %c0_i32_37 = arith.constant 0 : i32
    %61 = tpu.memref_slice %arg3[%10, %c0_i32_37] : memref<128x32xf32, #tpu.memory_space<any>> -> memref<1x32xf32, #tpu.memory_space<any>>
    %c1_i32_38 = arith.constant 1 : i32
    %c0_i32_39 = arith.constant 0 : i32
    %62 = tpu.memref_slice %arg5[%c1_i32_38, %c0_i32_39] : memref<8x32xf32, #tpu.memory_space<vmem>> -> memref<1x32xf32, #tpu.memory_space<vmem>>
    %63 = tpu.memref_slice %arg6[%c1_i32_36] : memref<8x!tpu.dma_semaphore, #tpu.memory_space<semaphore_mem>> -> memref<1x!tpu.dma_semaphore, #tpu.memory_space<semaphore_mem>>
    %64 = tpu.memref_squeeze %63 : memref<1x!tpu.dma_semaphore, #tpu.memory_space<semaphore_mem>> -> memref<!tpu.dma_semaphore, #tpu.memory_space<semaphore_mem>>
    tpu.wait_dma2 semaphore(%64 : memref<!tpu.dma_semaphore, #tpu.memory_space<semaphore_mem>>) src(%61 : memref<1x32xf32, #tpu.memory_space<any>>) dst(%62 : memref<1x32xf32, #tpu.memory_space<vmem>>)
    %c2_i32_40 = arith.constant 2 : i32
    %c0_i32_41 = arith.constant 0 : i32
    %65 = tpu.memref_slice %arg3[%17, %c0_i32_41] : memref<128x32xf32, #tpu.memory_space<any>> -> memref<1x32xf32, #tpu.memory_space<any>>
    %c2_i32_42 = arith.constant 2 : i32
    %c0_i32_43 = arith.constant 0 : i32
    %66 = tpu.memref_slice %arg5[%c2_i32_42, %c0_i32_43] : memref<8x32xf32, #tpu.memory_space<vmem>> -> memref<1x32xf32, #tpu.memory_space<vmem>>
    %67 = tpu.memref_slice %arg6[%c2_i32_40] : memref<8x!tpu.dma_semaphore, #tpu.memory_space<semaphore_mem>> -> memref<1x!tpu.dma_semaphore, #tpu.memory_space<semaphore_mem>>
    %68 = tpu.memref_squeeze %67 : memref<1x!tpu.dma_semaphore, #tpu.memory_space<semaphore_mem>> -> memref<!tpu.dma_semaphore, #tpu.memory_space<semaphore_mem>>
    tpu.wait_dma2 semaphore(%68 : memref<!tpu.dma_semaphore, #tpu.memory_space<semaphore_mem>>) src(%65 : memref<1x32xf32, #tpu.memory_space<any>>) dst(%66 : memref<1x32xf32, #tpu.memory_space<vmem>>)
    %c3_i32_44 = arith.constant 3 : i32
    %c0_i32_45 = arith.constant 0 : i32
    %69 = tpu.memref_slice %arg3[%24, %c0_i32_45] : memref<128x32xf32, #tpu.memory_space<any>> -> memref<1x32xf32, #tpu.memory_space<any>>
    %c3_i32_46 = arith.constant 3 : i32
    %c0_i32_47 = arith.constant 0 : i32
    %70 = tpu.memref_slice %arg5[%c3_i32_46, %c0_i32_47] : memref<8x32xf32, #tpu.memory_space<vmem>> -> memref<1x32xf32, #tpu.memory_space<vmem>>
    %71 = tpu.memref_slice %arg6[%c3_i32_44] : memref<8x!tpu.dma_semaphore, #tpu.memory_space<semaphore_mem>> -> memref<1x!tpu.dma_semaphore, #tpu.memory_space<semaphore_mem>>
    %72 = tpu.memref_squeeze %71 : memref<1x!tpu.dma_semaphore, #tpu.memory_space<semaphore_mem>> -> memref<!tpu.dma_semaphore, #tpu.memory_space<semaphore_mem>>
    tpu.wait_dma2 semaphore(%72 : memref<!tpu.dma_semaphore, #tpu.memory_space<semaphore_mem>>) src(%69 : memref<1x32xf32, #tpu.memory_space<any>>) dst(%70 : memref<1x32xf32, #tpu.memory_space<vmem>>)
    %c4_i32_48 = arith.constant 4 : i32
    %c0_i32_49 = arith.constant 0 : i32
    %73 = tpu.memref_slice %arg3[%31, %c0_i32_49] : memref<128x32xf32, #tpu.memory_space<any>> -> memref<1x32xf32, #tpu.memory_space<any>>
    %c4_i32_50 = arith.constant 4 : i32
    %c0_i32_51 = arith.constant 0 : i32
    %74 = tpu.memref_slice %arg5[%c4_i32_50, %c0_i32_51] : memref<8x32xf32, #tpu.memory_space<vmem>> -> memref<1x32xf32, #tpu.memory_space<vmem>>
    %75 = tpu.memref_slice %arg6[%c4_i32_48] : memref<8x!tpu.dma_semaphore, #tpu.memory_space<semaphore_mem>> -> memref<1x!tpu.dma_semaphore, #tpu.memory_space<semaphore_mem>>
    %76 = tpu.memref_squeeze %75 : memref<1x!tpu.dma_semaphore, #tpu.memory_space<semaphore_mem>> -> memref<!tpu.dma_semaphore, #tpu.memory_space<semaphore_mem>>
    tpu.wait_dma2 semaphore(%76 : memref<!tpu.dma_semaphore, #tpu.memory_space<semaphore_mem>>) src(%73 : memref<1x32xf32, #tpu.memory_space<any>>) dst(%74 : memref<1x32xf32, #tpu.memory_space<vmem>>)
    %c5_i32_52 = arith.constant 5 : i32
    %c0_i32_53 = arith.constant 0 : i32
    %77 = tpu.memref_slice %arg3[%38, %c0_i32_53] : memref<128x32xf32, #tpu.memory_space<any>> -> memref<1x32xf32, #tpu.memory_space<any>>
    %c5_i32_54 = arith.constant 5 : i32
    %c0_i32_55 = arith.constant 0 : i32
    %78 = tpu.memref_slice %arg5[%c5_i32_54, %c0_i32_55] : memref<8x32xf32, #tpu.memory_space<vmem>> -> memref<1x32xf32, #tpu.memory_space<vmem>>
    %79 = tpu.memref_slice %arg6[%c5_i32_52] : memref<8x!tpu.dma_semaphore, #tpu.memory_space<semaphore_mem>> -> memref<1x!tpu.dma_semaphore, #tpu.memory_space<semaphore_mem>>
    %80 = tpu.memref_squeeze %79 : memref<1x!tpu.dma_semaphore, #tpu.memory_space<semaphore_mem>> -> memref<!tpu.dma_semaphore, #tpu.memory_space<semaphore_mem>>
    tpu.wait_dma2 semaphore(%80 : memref<!tpu.dma_semaphore, #tpu.memory_space<semaphore_mem>>) src(%77 : memref<1x32xf32, #tpu.memory_space<any>>) dst(%78 : memref<1x32xf32, #tpu.memory_space<vmem>>)
    %c6_i32_56 = arith.constant 6 : i32
    %c0_i32_57 = arith.constant 0 : i32
    %81 = tpu.memref_slice %arg3[%45, %c0_i32_57] : memref<128x32xf32, #tpu.memory_space<any>> -> memref<1x32xf32, #tpu.memory_space<any>>
    %c6_i32_58 = arith.constant 6 : i32
    %c0_i32_59 = arith.constant 0 : i32
    %82 = tpu.memref_slice %arg5[%c6_i32_58, %c0_i32_59] : memref<8x32xf32, #tpu.memory_space<vmem>> -> memref<1x32xf32, #tpu.memory_space<vmem>>
    %83 = tpu.memref_slice %arg6[%c6_i32_56] : memref<8x!tpu.dma_semaphore, #tpu.memory_space<semaphore_mem>> -> memref<1x!tpu.dma_semaphore, #tpu.memory_space<semaphore_mem>>
    %84 = tpu.memref_squeeze %83 : memref<1x!tpu.dma_semaphore, #tpu.memory_space<semaphore_mem>> -> memref<!tpu.dma_semaphore, #tpu.memory_space<semaphore_mem>>
    tpu.wait_dma2 semaphore(%84 : memref<!tpu.dma_semaphore, #tpu.memory_space<semaphore_mem>>) src(%81 : memref<1x32xf32, #tpu.memory_space<any>>) dst(%82 : memref<1x32xf32, #tpu.memory_space<vmem>>)
    %c7_i32_60 = arith.constant 7 : i32
    %c0_i32_61 = arith.constant 0 : i32
    %85 = tpu.memref_slice %arg3[%52, %c0_i32_61] : memref<128x32xf32, #tpu.memory_space<any>> -> memref<1x32xf32, #tpu.memory_space<any>>
    %c7_i32_62 = arith.constant 7 : i32
    %c0_i32_63 = arith.constant 0 : i32
    %86 = tpu.memref_slice %arg5[%c7_i32_62, %c0_i32_63] : memref<8x32xf32, #tpu.memory_space<vmem>> -> memref<1x32xf32, #tpu.memory_space<vmem>>
    %87 = tpu.memref_slice %arg6[%c7_i32_60] : memref<8x!tpu.dma_semaphore, #tpu.memory_space<semaphore_mem>> -> memref<1x!tpu.dma_semaphore, #tpu.memory_space<semaphore_mem>>
    %88 = tpu.memref_squeeze %87 : memref<1x!tpu.dma_semaphore, #tpu.memory_space<semaphore_mem>> -> memref<!tpu.dma_semaphore, #tpu.memory_space<semaphore_mem>>
    tpu.wait_dma2 semaphore(%88 : memref<!tpu.dma_semaphore, #tpu.memory_space<semaphore_mem>>) src(%85 : memref<1x32xf32, #tpu.memory_space<any>>) dst(%86 : memref<1x32xf32, #tpu.memory_space<vmem>>)
    %c0 = arith.constant 0 : index
    %c0_64 = arith.constant 0 : index
    %89 = vector.load %arg5[%c0, %c0_64] : memref<8x32xf32, #tpu.memory_space<vmem>>, vector<8x32xf32>
    %c0_65 = arith.constant 0 : index
    %c0_66 = arith.constant 0 : index
    %90 = vector.load %arg4[%c0_65, %c0_66] : memref<8x32xf32, #tpu.memory_space<vmem>>, vector<8x32xf32>
    tpu.vector_store %arg4[%c0_65, %c0_66], %89 {strides = array<i32>} : memref<8x32xf32, #tpu.memory_space<vmem>>, vector<8x32xf32>,
    return
  }
  func.func @transform_1(%arg0: i32, %arg1: memref<16xi32, #tpu.memory_space<smem>>, %arg2: memref<1xi32, #tpu.memory_space<smem>>) -> (i32, i32) {
    %c0_i32 = arith.constant 0 : i32
    %c0_i32_0 = arith.constant 0 : i32
    return %arg0, %c0_i32 : i32, i32
  }
}

</mosaic_0001>

<llo_original>
// kernel: tpu_custom_call.1
$region0: #{tpu_custom_call.1}
  #allocation0 [shape = 'u32[]', space=smem, size = 0x4, offset = 0x4, fixed_abs, tag = 'smem constant byte address 0x4 - core index']
  #allocation1 [shape = 'u32[144,128]{1,0:T(1,128)}', space=vmem, size = 0x12000, scoped, tag = 'internal scratch']
  #allocation2 [shape = 'f32[8,32]{1,0:T(8,128)}', space=vmem, size = 0x1000, scoped, tag = 'scratch operand']
  #allocation3 [shape = 's32[8]{0}', space=sflag, size = 0x20, scoped, tag = 'scratch operand']
  #allocation4 [shape = 's32[1]{0}', space=sflag, size = 0x4, scoped, tag = 'scoped memory for tpu_custom_call.1']
  #allocation5 [shape = 'u8[512]{0}', space=smem, size = 0x200, scoped, tag = 'prefetched SMEM operand 0']
  #allocation6 [shape = 's32[1]{0:T(128)S(6)}', space=smem, size = 0x200, scoped, tag = 'prefetched SMEM operand 1']
  #allocation9 [shape = 's32[]', space=sflag, size = 0x4, offset = 0, fixed_abs, tag = 'sflag constant byte address 0x0 - dummy sync flag']
  #allocation10 [shape = 's32[]', space=sflag, size = 0x4, offset = 0, fixed_abs, tag = 'sflag constant byte address 0x0 - dummy sync flag']
  #allocation11 [shape = 's32[]', space=sflag, size = 0x4, offset = 0, fixed_abs, tag = 'sflag constant byte address 0x0 - dummy sync flag']
  #allocation12 [shape = 's32[]', space=sflag, size = 0x4, offset = 0, fixed_abs, tag = 'sflag constant byte address 0x0 - dummy sync flag']
  #allocation13 [shape = 's32[]', space=sflag, size = 0x4, offset = 0, fixed_abs, tag = 'sflag constant byte address 0x0 - dummy sync flag']
  #allocation14 [shape = 's32[]', space=sflag, size = 0x4, offset = 0, fixed_abs, tag = 'sflag constant byte address 0x0 - dummy sync flag']
  #allocation15 [shape = 's32[]', space=sflag, size = 0x4, offset = 0, fixed_abs, tag = 'sflag constant byte address 0x0 - dummy sync flag']
  #allocation16 [shape = 's32[]', space=sflag, size = 0x4, offset = 0, fixed_abs, tag = 'sflag constant byte address 0x0 - dummy sync flag']
  %s0 = inlined_call_operand.vmem [shape: s32[16], index: 0, kind: input, shape index: {}]
  %s1 = inlined_call_operand.<no memory space> [shape: s32[1], index: 1, kind: input, shape index: {}]
  %s2 = inlined_call_operand.vmem [shape: f32[128,32], index: 2, kind: input, shape index: {}]
  %s3 = inlined_call_operand.hbm [shape: f32[16,32], index: 3, kind: output, shape index: {}]
  %s4 = sld [smem:[#allocation0]]
  $region265: #{tpu_custom_call.1} parent=0
    _
  %s6 = ssub.s32 1, %s4
  %s7 = scalar_select 0, %s6, %s4
  %s8 = sshll.u32 %s0, 4
  %s9 = int_to_ptr.vmem [resolvable:$true] %s8
  %11 = dma.vmem_to_smem %s9, 16, [#allocation5], [#allocation4]
  %12 = sst [smem:[#allocation6]] %s1
  %13 = dma.done [#allocation4], 16
  %14 = sfence
  $region1: #{tpu_custom_call.1} parent=0
    #allocation7 [shape = 'u8[8192]{0}', space=vmem, size = 0x2000, scoped, tag = 'output window, operand 0']
    #allocation8 [shape = 's32[2]{0}', space=sflag, size = 0x8, scoped, tag = 'scoped memory for tpu_custom_call.1']
    %15 = vsyncpa [#allocation8], 0
    %s16 = scalar_lea.sflag [#allocation8], 1
    %17 = vsyncpa %s16, 0
    loop: start=0, step=1, limit=3
    $region2: #{tpu_custom_call.1} parent=1 // loop_pre_header
      _
    $region3: #{tpu_custom_call.1} parent=1 // loop_header
      %s19 = sphi 0, %s23
      %p20 = scmp.ge.s32.totalorder %s19, 3
      %s28 = sphi 0, %s30
      %s31 = sphi 0, %s28
      %s41 = sphi 0, %s31
    $region4: #{tpu_custom_call.1} parent=1 // loop_header_branch
      %22 = sbr.rel (%p20) target = $region8
    $region5: #{tpu_custom_call.1} parent=1 // loop_body
      %s24 = ssub.s32 %s19, 1
      %s25 = sadd.s32 %s19, 1
      %s26 = ssub.s32 %s19, %s25
      %p27 = scmp.eq.s32.totalorder %s26, 0
      %s29 = sadd.s32 %s28, 1
      %s30 = scalar_select %p27, %s28, %s29
      %p32 = pneg %p27
      %p33 = scmp.eq.s32.totalorder %s19, 1
      %p34 = por %p32, %p33
      %p35 = scmp.ne.s32.totalorder %s28, %s31
      %p36 = scmp.eq.s32.totalorder %s19, 0
      %p37 = por %p35, %p36
      %p38 = scmp.ne.s32.totalorder %s28, %s31
      %p39 = scmp.eq.s32.totalorder %s24, 1
      %p40 = por %p38, %p39
      %p42 = scmp.ne.s32.totalorder %s31, %s41
      %p43 = scmp.eq.s32.totalorder %s24, 0
      %p44 = por %p42, %p43
      %p45 = scmp.lt.s32.totalorder %s19, 2
      // Predicated region
      $region9: #{tpu_custom_call.1} parent=5 // pred_check
        %p46 = pneg %p45
      $region10: #{tpu_custom_call.1} parent=5 // pred_check_branch
        %48 = sbr.rel (%p46) target = $region12
      $region11: #{tpu_custom_call.1} parent=5 // pred_region
        %p49 = pneg %p37
        %p50 = pneg %p34
        %s51 = sand.u32 %s28, 1
        %s52 = scalar_lea.sflag [#allocation8], %s51
        %s53 = sand.u32 %s28, 1
        %s54 = smul.addr %s53, 8
        %s55 = scalar_lea.vmem [#allocation7], %s54
        %s56 = smul.u32 %s19, 8
        %s57 = sld [smem:[#allocation5 + %s56]]
        %s58 = scalar_lea.vmem %s2, %s57
        %p60 = scmp.lt.u32.totalorder 1, 8
        %p61 = pneg %p60
        // Predicated region
        $region13: #{tpu_custom_call.1} parent=11 // pred_check
          _
        $region14: #{tpu_custom_call.1} parent=11 // pred_check_branch
          %63 = sbr.rel (%p60) target = $region16
        $region15: #{tpu_custom_call.1} parent=11 // pred_region
          %s79 = sand.u32 1, 7
          %p80 = scmp.eq.s32.totalorder %s79, 0
          %p81 = pneg %p80
          // Predicated region
          $region28: #{tpu_custom_call.1} parent=15 // pred_check
            _
          $region29: #{tpu_custom_call.1} parent=15 // pred_check_branch
            %83 = sbr.rel (%p80) target = $region31
          $region30: #{tpu_custom_call.1} parent=15 // pred_region
            %s84 = sand.u32 1, 7
            %s85 = ssub.s32 1, %s84
            %s86 = scalar_lea.vmem %s58, %s85
            %s87 = ssub.s32 1, %s84
            %s88 = scalar_lea.vmem [#allocation2], %s87
            %s89 = sshll.u32 1, %s84
            %s90 = ssub.s32 %s89, 1
            loop: start=0, step=1, limit=1
            $region32: #{tpu_custom_call.1} parent=30 // loop_pre_header
              _
            $region33: #{tpu_custom_call.1} parent=30 // loop_header
              %s92 = sphi 0, %s96
              %p93 = scmp.ge.s32.totalorder %s92, 1
              %s97 = sphi %s86, %s86
              %s98 = sphi %s88, %s88
            $region34: #{tpu_custom_call.1} parent=30 // loop_header_branch
              %95 = sbr.rel (%p93) target = $region38
            $region35: #{tpu_custom_call.1} parent=30 // loop_body
              %v99 = vld [vmem:[%s97] sm:%s90]
              %100 = vst [vmem:[%s98] sm:%s90] %v99
            $region36: #{tpu_custom_call.1} parent=30 // loop_footer
              %s96 = sadd.s32 1, %s92
            $region37: #{tpu_custom_call.1} parent=30 // loop_footer_branch
              %91 = sbr.rel target = $region33
            $region38: #{tpu_custom_call.1} parent=30 // loop_exit
              _
          $region31: #{tpu_custom_call.1} parent=15 // pred_fallthru
            _
        $region16: #{tpu_custom_call.1} parent=11 // pred_fallthru
          _
        // Predicated region
        $region17: #{tpu_custom_call.1} parent=11 // pred_check
          %p64 = pneg %p60
        $region18: #{tpu_custom_call.1} parent=11 // pred_check_branch
          %66 = sbr.rel (%p64) target = $region20
        $region19: #{tpu_custom_call.1} parent=11 // pred_region
          %s67 = sshll.u32 1, 1
          %s68 = ssub.s32 %s67, 1
          loop: start=0, step=1, limit=1
          $region21: #{tpu_custom_call.1} parent=19 // loop_pre_header
            _
          $region22: #{tpu_custom_call.1} parent=19 // loop_header
            %s70 = sphi 0, %s74
            %p71 = scmp.ge.s32.totalorder %s70, 1
            %s75 = sphi %s58, %s58
            %s76 = sphi [#allocation2], [#allocation2]
          $region23: #{tpu_custom_call.1} parent=19 // loop_header_branch
            %73 = sbr.rel (%p71) target = $region27
          $region24: #{tpu_custom_call.1} parent=19 // loop_body
            %v77 = vld [vmem:[%s75] sm:%s68]
            %78 = vst [vmem:[%s76] sm:%s68] %v77
          $region25: #{tpu_custom_call.1} parent=19 // loop_footer
            %s74 = sadd.s32 1, %s70
          $region26: #{tpu_custom_call.1} parent=19 // loop_footer_branch
            %69 = sbr.rel target = $region22
          $region27: #{tpu_custom_call.1} parent=19 // loop_exit
            _
        $region20: #{tpu_custom_call.1} parent=11 // pred_fallthru
          _
        // Predicated region
        $region39: #{tpu_custom_call.1} parent=11 // pred_check
          _
        $region40: #{tpu_custom_call.1} parent=11 // pred_check_branch
          %103 = sbr.rel (0) target = $region42
        $region41: #{tpu_custom_call.1} parent=11 // pred_region
          %104 = vsyncadd [#allocation3], 16
        $region42: #{tpu_custom_call.1} parent=11 // pred_fallthru
          _
        %s105 = sadd.s32 %s56, 1
        %s106 = sld [smem:[#allocation5 + %s105]]
        %s107 = scalar_lea.vmem %s2, %s106
        %s108 = scalar_lea.vmem [#allocation2], 1
        %s109 = scalar_lea.sflag [#allocation3], 1
        %p111 = scmp.lt.u32.totalorder 1, 8
        %p112 = pneg %p111
        // Predicated region
        $region43: #{tpu_custom_call.1} parent=11 // pred_check
          _
        $region44: #{tpu_custom_call.1} parent=11 // pred_check_branch
          %114 = sbr.rel (%p111) target = $region46
        $region45: #{tpu_custom_call.1} parent=11 // pred_region
          %s130 = sand.u32 1, 7
          %p131 = scmp.eq.s32.totalorder %s130, 0
          %p132 = pneg %p131
          // Predicated region
          $region58: #{tpu_custom_call.1} parent=45 // pred_check
            _
          $region59: #{tpu_custom_call.1} parent=45 // pred_check_branch
            %134 = sbr.rel (%p131) target = $region61
          $region60: #{tpu_custom_call.1} parent=45 // pred_region
            %s135 = sand.u32 1, 7
            %s136 = ssub.s32 1, %s135
            %s137 = scalar_lea.vmem %s107, %s136
            %s138 = ssub.s32 1, %s135
            %s139 = scalar_lea.vmem %s108, %s138 [#allocation2]
            %s140 = sshll.u32 1, %s135
            %s141 = ssub.s32 %s140, 1
            loop: start=0, step=1, limit=1
            $region62: #{tpu_custom_call.1} parent=60 // loop_pre_header
              _
            $region63: #{tpu_custom_call.1} parent=60 // loop_header
              %s143 = sphi 0, %s147
              %p144 = scmp.ge.s32.totalorder %s143, 1
              %s148 = sphi %s137, %s137
              %s149 = sphi %s139, %s139
            $region64: #{tpu_custom_call.1} parent=60 // loop_header_branch
              %146 = sbr.rel (%p144) target = $region68
            $region65: #{tpu_custom_call.1} parent=60 // loop_body
              %v150 = vld [vmem:[%s148] sm:%s141]
              %151 = vst [vmem:[%s149] sm:%s141] %v150
            $region66: #{tpu_custom_call.1} parent=60 // loop_footer
              %s147 = sadd.s32 1, %s143
            $region67: #{tpu_custom_call.1} parent=60 // loop_footer_branch
              %142 = sbr.rel target = $region63
            $region68: #{tpu_custom_call.1} parent=60 // loop_exit
              _
          $region61: #{tpu_custom_call.1} parent=45 // pred_fallthru
            _
        $region46: #{tpu_custom_call.1} parent=11 // pred_fallthru
          _
        // Predicated region
        $region47: #{tpu_custom_call.1} parent=11 // pred_check
          %p115 = pneg %p111
        $region48: #{tpu_custom_call.1} parent=11 // pred_check_branch
          %117 = sbr.rel (%p115) target = $region50
        $region49: #{tpu_custom_call.1} parent=11 // pred_region
          %s118 = sshll.u32 1, 1
          %s119 = ssub.s32 %s118, 1
          loop: start=0, step=1, limit=1
          $region51: #{tpu_custom_call.1} parent=49 // loop_pre_header
            _
          $region52: #{tpu_custom_call.1} parent=49 // loop_header
            %s121 = sphi 0, %s125
            %p122 = scmp.ge.s32.totalorder %s121, 1
            %s126 = sphi %s107, %s107
            %s127 = sphi %s108, %s108
          $region53: #{tpu_custom_call.1} parent=49 // loop_header_branch
            %124 = sbr.rel (%p122) target = $region57
          $region54: #{tpu_custom_call.1} parent=49 // loop_body
            %v128 = vld [vmem:[%s126] sm:%s119]
            %129 = vst [vmem:[%s127] sm:%s119] %v128
          $region55: #{tpu_custom_call.1} parent=49 // loop_footer
            %s125 = sadd.s32 1, %s121
          $region56: #{tpu_custom_call.1} parent=49 // loop_footer_branch
            %120 = sbr.rel target = $region52
          $region57: #{tpu_custom_call.1} parent=49 // loop_exit
            _
        $region50: #{tpu_custom_call.1} parent=11 // pred_fallthru
          _
        // Predicated region
        $region69: #{tpu_custom_call.1} parent=11 // pred_check
          _
        $region70: #{tpu_custom_call.1} parent=11 // pred_check_branch
          %154 = sbr.rel (0) target = $region72
        $region71: #{tpu_custom_call.1} parent=11 // pred_region
          %155 = vsyncadd %s109, 16
        $region72: #{tpu_custom_call.1} parent=11 // pred_fallthru
          _
        %s156 = sadd.s32 %s56, 2
        %s157 = sld [smem:[#allocation5 + %s156]]
        %s158 = scalar_lea.vmem %s2, %s157
        %s159 = scalar_lea.vmem [#allocation2], 2
        %s160 = scalar_lea.sflag [#allocation3], 2
        %p162 = scmp.lt.u32.totalorder 1, 8
        %p163 = pneg %p162
        // Predicated region
        $region73: #{tpu_custom_call.1} parent=11 // pred_check
          _
        $region74: #{tpu_custom_call.1} parent=11 // pred_check_branch
          %165 = sbr.rel (%p162) target = $region76
        $region75: #{tpu_custom_call.1} parent=11 // pred_region
          %s181 = sand.u32 1, 7
          %p182 = scmp.eq.s32.totalorder %s181, 0
          %p183 = pneg %p182
          // Predicated region
          $region88: #{tpu_custom_call.1} parent=75 // pred_check
            _
          $region89: #{tpu_custom_call.1} parent=75 // pred_check_branch
            %185 = sbr.rel (%p182) target = $region91
          $region90: #{tpu_custom_call.1} parent=75 // pred_region
            %s186 = sand.u32 1, 7
            %s187 = ssub.s32 1, %s186
            %s188 = scalar_lea.vmem %s158, %s187
            %s189 = ssub.s32 1, %s186
            %s190 = scalar_lea.vmem %s159, %s189 [#allocation2]
            %s191 = sshll.u32 1, %s186
            %s192 = ssub.s32 %s191, 1
            loop: start=0, step=1, limit=1
            $region92: #{tpu_custom_call.1} parent=90 // loop_pre_header
              _
            $region93: #{tpu_custom_call.1} parent=90 // loop_header
              %s194 = sphi 0, %s198
              %p195 = scmp.ge.s32.totalorder %s194, 1
              %s199 = sphi %s188, %s188
              %s200 = sphi %s190, %s190
            $region94: #{tpu_custom_call.1} parent=90 // loop_header_branch
              %197 = sbr.rel (%p195) target = $region98
            $region95: #{tpu_custom_call.1} parent=90 // loop_body
              %v201 = vld [vmem:[%s199] sm:%s192]
              %202 = vst [vmem:[%s200] sm:%s192] %v201
            $region96: #{tpu_custom_call.1} parent=90 // loop_footer
              %s198 = sadd.s32 1, %s194
            $region97: #{tpu_custom_call.1} parent=90 // loop_footer_branch
              %193 = sbr.rel target = $region93
            $region98: #{tpu_custom_call.1} parent=90 // loop_exit
              _
          $region91: #{tpu_custom_call.1} parent=75 // pred_fallthru
            _
        $region76: #{tpu_custom_call.1} parent=11 // pred_fallthru
          _
        // Predicated region
        $region77: #{tpu_custom_call.1} parent=11 // pred_check
          %p166 = pneg %p162
        $region78: #{tpu_custom_call.1} parent=11 // pred_check_branch
          %168 = sbr.rel (%p166) target = $region80
        $region79: #{tpu_custom_call.1} parent=11 // pred_region
          %s169 = sshll.u32 1, 1
          %s170 = ssub.s32 %s169, 1
          loop: start=0, step=1, limit=1
          $region81: #{tpu_custom_call.1} parent=79 // loop_pre_header
            _
          $region82: #{tpu_custom_call.1} parent=79 // loop_header
            %s172 = sphi 0, %s176
            %p173 = scmp.ge.s32.totalorder %s172, 1
            %s177 = sphi %s158, %s158
            %s178 = sphi %s159, %s159
          $region83: #{tpu_custom_call.1} parent=79 // loop_header_branch
            %175 = sbr.rel (%p173) target = $region87
          $region84: #{tpu_custom_call.1} parent=79 // loop_body
            %v179 = vld [vmem:[%s177] sm:%s170]
            %180 = vst [vmem:[%s178] sm:%s170] %v179
          $region85: #{tpu_custom_call.1} parent=79 // loop_footer
            %s176 = sadd.s32 1, %s172
          $region86: #{tpu_custom_call.1} parent=79 // loop_footer_branch
            %171 = sbr.rel target = $region82
          $region87: #{tpu_custom_call.1} parent=79 // loop_exit
            _
        $region80: #{tpu_custom_call.1} parent=11 // pred_fallthru
          _
        // Predicated region
        $region99: #{tpu_custom_call.1} parent=11 // pred_check
          _
        $region100: #{tpu_custom_call.1} parent=11 // pred_check_branch
          %205 = sbr.rel (0) target = $region102
        $region101: #{tpu_custom_call.1} parent=11 // pred_region
          %206 = vsyncadd %s160, 16
        $region102: #{tpu_custom_call.1} parent=11 // pred_fallthru
          _
        %s207 = sadd.s32 %s56, 3
        %s208 = sld [smem:[#allocation5 + %s207]]
        %s209 = scalar_lea.vmem %s2, %s208
        %s210 = scalar_lea.vmem [#allocation2], 3
        %s211 = scalar_lea.sflag [#allocation3], 3
        %p213 = scmp.lt.u32.totalorder 1, 8
        %p214 = pneg %p213
        // Predicated region
        $region103: #{tpu_custom_call.1} parent=11 // pred_check
          _
        $region104: #{tpu_custom_call.1} parent=11 // pred_check_branch
          %216 = sbr.rel (%p213) target = $region106
        $region105: #{tpu_custom_call.1} parent=11 // pred_region
          %s232 = sand.u32 1, 7
          %p233 = scmp.eq.s32.totalorder %s232, 0
          %p234 = pneg %p233
          // Predicated region
          $region118: #{tpu_custom_call.1} parent=105 // pred_check
            _
          $region119: #{tpu_custom_call.1} parent=105 // pred_check_branch
            %236 = sbr.rel (%p233) target = $region121
          $region120: #{tpu_custom_call.1} parent=105 // pred_region
            %s237 = sand.u32 1, 7
            %s238 = ssub.s32 1, %s237
            %s239 = scalar_lea.vmem %s209, %s238
            %s240 = ssub.s32 1, %s237
            %s241 = scalar_lea.vmem %s210, %s240 [#allocation2]
            %s242 = sshll.u32 1, %s237
            %s243 = ssub.s32 %s242, 1
            loop: start=0, step=1, limit=1
            $region122: #{tpu_custom_call.1} parent=120 // loop_pre_header
              _
            $region123: #{tpu_custom_call.1} parent=120 // loop_header
              %s245 = sphi 0, %s249
              %p246 = scmp.ge.s32.totalorder %s245, 1
              %s250 = sphi %s239, %s239
              %s251 = sphi %s241, %s241
            $region124: #{tpu_custom_call.1} parent=120 // loop_header_branch
              %248 = sbr.rel (%p246) target = $region128
            $region125: #{tpu_custom_call.1} parent=120 // loop_body
              %v252 = vld [vmem:[%s250] sm:%s243]
              %253 = vst [vmem:[%s251] sm:%s243] %v252
            $region126: #{tpu_custom_call.1} parent=120 // loop_footer
              %s249 = sadd.s32 1, %s245
            $region127: #{tpu_custom_call.1} parent=120 // loop_footer_branch
              %244 = sbr.rel target = $region123
            $region128: #{tpu_custom_call.1} parent=120 // loop_exit
              _
          $region121: #{tpu_custom_call.1} parent=105 // pred_fallthru
            _
        $region106: #{tpu_custom_call.1} parent=11 // pred_fallthru
          _
        // Predicated region
        $region107: #{tpu_custom_call.1} parent=11 // pred_check
          %p217 = pneg %p213
        $region108: #{tpu_custom_call.1} parent=11 // pred_check_branch
          %219 = sbr.rel (%p217) target = $region110
        $region109: #{tpu_custom_call.1} parent=11 // pred_region
          %s220 = sshll.u32 1, 1
          %s221 = ssub.s32 %s220, 1
          loop: start=0, step=1, limit=1
          $region111: #{tpu_custom_call.1} parent=109 // loop_pre_header
            _
          $region112: #{tpu_custom_call.1} parent=109 // loop_header
            %s223 = sphi 0, %s227
            %p224 = scmp.ge.s32.totalorder %s223, 1
            %s228 = sphi %s209, %s209
            %s229 = sphi %s210, %s210
          $region113: #{tpu_custom_call.1} parent=109 // loop_header_branch
            %226 = sbr.rel (%p224) target = $region117
          $region114: #{tpu_custom_call.1} parent=109 // loop_body
            %v230 = vld [vmem:[%s228] sm:%s221]
            %231 = vst [vmem:[%s229] sm:%s221] %v230
          $region115: #{tpu_custom_call.1} parent=109 // loop_footer
            %s227 = sadd.s32 1, %s223
          $region116: #{tpu_custom_call.1} parent=109 // loop_footer_branch
            %222 = sbr.rel target = $region112
          $region117: #{tpu_custom_call.1} parent=109 // loop_exit
            _
        $region110: #{tpu_custom_call.1} parent=11 // pred_fallthru
          _
        // Predicated region
        $region129: #{tpu_custom_call.1} parent=11 // pred_check
          _
        $region130: #{tpu_custom_call.1} parent=11 // pred_check_branch
          %256 = sbr.rel (0) target = $region132
        $region131: #{tpu_custom_call.1} parent=11 // pred_region
          %257 = vsyncadd %s211, 16
        $region132: #{tpu_custom_call.1} parent=11 // pred_fallthru
          _
        %s258 = sadd.s32 %s56, 4
        %s259 = sld [smem:[#allocation5 + %s258]]
        %s260 = scalar_lea.vmem %s2, %s259
        %s261 = scalar_lea.vmem [#allocation2], 4
        %s262 = scalar_lea.sflag [#allocation3], 4
        %p264 = scmp.lt.u32.totalorder 1, 8
        %p265 = pneg %p264
        // Predicated region
        $region133: #{tpu_custom_call.1} parent=11 // pred_check
          _
        $region134: #{tpu_custom_call.1} parent=11 // pred_check_branch
          %267 = sbr.rel (%p264) target = $region136
        $region135: #{tpu_custom_call.1} parent=11 // pred_region
          %s283 = sand.u32 1, 7
          %p284 = scmp.eq.s32.totalorder %s283, 0
          %p285 = pneg %p284
          // Predicated region
          $region148: #{tpu_custom_call.1} parent=135 // pred_check
            _
          $region149: #{tpu_custom_call.1} parent=135 // pred_check_branch
            %287 = sbr.rel (%p284) target = $region151
          $region150: #{tpu_custom_call.1} parent=135 // pred_region
            %s288 = sand.u32 1, 7
            %s289 = ssub.s32 1, %s288
            %s290 = scalar_lea.vmem %s260, %s289
            %s291 = ssub.s32 1, %s288
            %s292 = scalar_lea.vmem %s261, %s291 [#allocation2]
            %s293 = sshll.u32 1, %s288
            %s294 = ssub.s32 %s293, 1
            loop: start=0, step=1, limit=1
            $region152: #{tpu_custom_call.1} parent=150 // loop_pre_header
              _
            $region153: #{tpu_custom_call.1} parent=150 // loop_header
              %s296 = sphi 0, %s300
              %p297 = scmp.ge.s32.totalorder %s296, 1
              %s301 = sphi %s290, %s290
              %s302 = sphi %s292, %s292
            $region154: #{tpu_custom_call.1} parent=150 // loop_header_branch
              %299 = sbr.rel (%p297) target = $region158
            $region155: #{tpu_custom_call.1} parent=150 // loop_body
              %v303 = vld [vmem:[%s301] sm:%s294]
              %304 = vst [vmem:[%s302] sm:%s294] %v303
            $region156: #{tpu_custom_call.1} parent=150 // loop_footer
              %s300 = sadd.s32 1, %s296
            $region157: #{tpu_custom_call.1} parent=150 // loop_footer_branch
              %295 = sbr.rel target = $region153
            $region158: #{tpu_custom_call.1} parent=150 // loop_exit
              _
          $region151: #{tpu_custom_call.1} parent=135 // pred_fallthru
            _
        $region136: #{tpu_custom_call.1} parent=11 // pred_fallthru
          _
        // Predicated region
        $region137: #{tpu_custom_call.1} parent=11 // pred_check
          %p268 = pneg %p264
        $region138: #{tpu_custom_call.1} parent=11 // pred_check_branch
          %270 = sbr.rel (%p268) target = $region140
        $region139: #{tpu_custom_call.1} parent=11 // pred_region
          %s271 = sshll.u32 1, 1
          %s272 = ssub.s32 %s271, 1
          loop: start=0, step=1, limit=1
          $region141: #{tpu_custom_call.1} parent=139 // loop_pre_header
            _
          $region142: #{tpu_custom_call.1} parent=139 // loop_header
            %s274 = sphi 0, %s278
            %p275 = scmp.ge.s32.totalorder %s274, 1
            %s279 = sphi %s260, %s260
            %s280 = sphi %s261, %s261
          $region143: #{tpu_custom_call.1} parent=139 // loop_header_branch
            %277 = sbr.rel (%p275) target = $region147
          $region144: #{tpu_custom_call.1} parent=139 // loop_body
            %v281 = vld [vmem:[%s279] sm:%s272]
            %282 = vst [vmem:[%s280] sm:%s272] %v281
          $region145: #{tpu_custom_call.1} parent=139 // loop_footer
            %s278 = sadd.s32 1, %s274
          $region146: #{tpu_custom_call.1} parent=139 // loop_footer_branch
            %273 = sbr.rel target = $region142
          $region147: #{tpu_custom_call.1} parent=139 // loop_exit
            _
        $region140: #{tpu_custom_call.1} parent=11 // pred_fallthru
          _
        // Predicated region
        $region159: #{tpu_custom_call.1} parent=11 // pred_check
          _
        $region160: #{tpu_custom_call.1} parent=11 // pred_check_branch
          %307 = sbr.rel (0) target = $region162
        $region161: #{tpu_custom_call.1} parent=11 // pred_region
          %308 = vsyncadd %s262, 16
        $region162: #{tpu_custom_call.1} parent=11 // pred_fallthru
          _
        %s309 = sadd.s32 %s56, 5
        %s310 = sld [smem:[#allocation5 + %s309]]
        %s311 = scalar_lea.vmem %s2, %s310
        %s312 = scalar_lea.vmem [#allocation2], 5
        %s313 = scalar_lea.sflag [#allocation3], 5
        %p315 = scmp.lt.u32.totalorder 1, 8
        %p316 = pneg %p315
        // Predicated region
        $region163: #{tpu_custom_call.1} parent=11 // pred_check
          _
        $region164: #{tpu_custom_call.1} parent=11 // pred_check_branch
          %318 = sbr.rel (%p315) target = $region166
        $region165: #{tpu_custom_call.1} parent=11 // pred_region
          %s334 = sand.u32 1, 7
          %p335 = scmp.eq.s32.totalorder %s334, 0
          %p336 = pneg %p335
          // Predicated region
          $region178: #{tpu_custom_call.1} parent=165 // pred_check
            _
          $region179: #{tpu_custom_call.1} parent=165 // pred_check_branch
            %338 = sbr.rel (%p335) target = $region181
          $region180: #{tpu_custom_call.1} parent=165 // pred_region
            %s339 = sand.u32 1, 7
            %s340 = ssub.s32 1, %s339
            %s341 = scalar_lea.vmem %s311, %s340
            %s342 = ssub.s32 1, %s339
            %s343 = scalar_lea.vmem %s312, %s342 [#allocation2]
            %s344 = sshll.u32 1, %s339
            %s345 = ssub.s32 %s344, 1
            loop: start=0, step=1, limit=1
            $region182: #{tpu_custom_call.1} parent=180 // loop_pre_header
              _
            $region183: #{tpu_custom_call.1} parent=180 // loop_header
              %s347 = sphi 0, %s351
              %p348 = scmp.ge.s32.totalorder %s347, 1
              %s352 = sphi %s341, %s341
              %s353 = sphi %s343, %s343
            $region184: #{tpu_custom_call.1} parent=180 // loop_header_branch
              %350 = sbr.rel (%p348) target = $region188
            $region185: #{tpu_custom_call.1} parent=180 // loop_body
              %v354 = vld [vmem:[%s352] sm:%s345]
              %355 = vst [vmem:[%s353] sm:%s345] %v354
            $region186: #{tpu_custom_call.1} parent=180 // loop_footer
              %s351 = sadd.s32 1, %s347
            $region187: #{tpu_custom_call.1} parent=180 // loop_footer_branch
              %346 = sbr.rel target = $region183
            $region188: #{tpu_custom_call.1} parent=180 // loop_exit
              _
          $region181: #{tpu_custom_call.1} parent=165 // pred_fallthru
            _
        $region166: #{tpu_custom_call.1} parent=11 // pred_fallthru
          _
        // Predicated region
        $region167: #{tpu_custom_call.1} parent=11 // pred_check
          %p319 = pneg %p315
        $region168: #{tpu_custom_call.1} parent=11 // pred_check_branch
          %321 = sbr.rel (%p319) target = $region170
        $region169: #{tpu_custom_call.1} parent=11 // pred_region
          %s322 = sshll.u32 1, 1
          %s323 = ssub.s32 %s322, 1
          loop: start=0, step=1, limit=1
          $region171: #{tpu_custom_call.1} parent=169 // loop_pre_header
            _
          $region172: #{tpu_custom_call.1} parent=169 // loop_header
            %s325 = sphi 0, %s329
            %p326 = scmp.ge.s32.totalorder %s325, 1
            %s330 = sphi %s311, %s311
            %s331 = sphi %s312, %s312
          $region173: #{tpu_custom_call.1} parent=169 // loop_header_branch
            %328 = sbr.rel (%p326) target = $region177
          $region174: #{tpu_custom_call.1} parent=169 // loop_body
            %v332 = vld [vmem:[%s330] sm:%s323]
            %333 = vst [vmem:[%s331] sm:%s323] %v332
          $region175: #{tpu_custom_call.1} parent=169 // loop_footer
            %s329 = sadd.s32 1, %s325
          $region176: #{tpu_custom_call.1} parent=169 // loop_footer_branch
            %324 = sbr.rel target = $region172
          $region177: #{tpu_custom_call.1} parent=169 // loop_exit
            _
        $region170: #{tpu_custom_call.1} parent=11 // pred_fallthru
          _
        // Predicated region
        $region189: #{tpu_custom_call.1} parent=11 // pred_check
          _
        $region190: #{tpu_custom_call.1} parent=11 // pred_check_branch
          %358 = sbr.rel (0) target = $region192
        $region191: #{tpu_custom_call.1} parent=11 // pred_region
          %359 = vsyncadd %s313, 16
        $region192: #{tpu_custom_call.1} parent=11 // pred_fallthru
          _
        %s360 = sadd.s32 %s56, 6
        %s361 = sld [smem:[#allocation5 + %s360]]
        %s362 = scalar_lea.vmem %s2, %s361
        %s363 = scalar_lea.vmem [#allocation2], 6
        %s364 = scalar_lea.sflag [#allocation3], 6
        %p366 = scmp.lt.u32.totalorder 1, 8
        %p367 = pneg %p366
        // Predicated region
        $region193: #{tpu_custom_call.1} parent=11 // pred_check
          _
        $region194: #{tpu_custom_call.1} parent=11 // pred_check_branch
          %369 = sbr.rel (%p366) target = $region196
        $region195: #{tpu_custom_call.1} parent=11 // pred_region
          %s385 = sand.u32 1, 7
          %p386 = scmp.eq.s32.totalorder %s385, 0
          %p387 = pneg %p386
          // Predicated region
          $region208: #{tpu_custom_call.1} parent=195 // pred_check
            _
          $region209: #{tpu_custom_call.1} parent=195 // pred_check_branch
            %389 = sbr.rel (%p386) target = $region211
          $region210: #{tpu_custom_call.1} parent=195 // pred_region
            %s390 = sand.u32 1, 7
            %s391 = ssub.s32 1, %s390
            %s392 = scalar_lea.vmem %s362, %s391
            %s393 = ssub.s32 1, %s390
            %s394 = scalar_lea.vmem %s363, %s393 [#allocation2]
            %s395 = sshll.u32 1, %s390
            %s396 = ssub.s32 %s395, 1
            loop: start=0, step=1, limit=1
            $region212: #{tpu_custom_call.1} parent=210 // loop_pre_header
              _
            $region213: #{tpu_custom_call.1} parent=210 // loop_header
              %s398 = sphi 0, %s402
              %p399 = scmp.ge.s32.totalorder %s398, 1
              %s403 = sphi %s392, %s392
              %s404 = sphi %s394, %s394
            $region214: #{tpu_custom_call.1} parent=210 // loop_header_branch
              %401 = sbr.rel (%p399) target = $region218
            $region215: #{tpu_custom_call.1} parent=210 // loop_body
              %v405 = vld [vmem:[%s403] sm:%s396]
              %406 = vst [vmem:[%s404] sm:%s396] %v405
            $region216: #{tpu_custom_call.1} parent=210 // loop_footer
              %s402 = sadd.s32 1, %s398
            $region217: #{tpu_custom_call.1} parent=210 // loop_footer_branch
              %397 = sbr.rel target = $region213
            $region218: #{tpu_custom_call.1} parent=210 // loop_exit
              _
          $region211: #{tpu_custom_call.1} parent=195 // pred_fallthru
            _
        $region196: #{tpu_custom_call.1} parent=11 // pred_fallthru
          _
        // Predicated region
        $region197: #{tpu_custom_call.1} parent=11 // pred_check
          %p370 = pneg %p366
        $region198: #{tpu_custom_call.1} parent=11 // pred_check_branch
          %372 = sbr.rel (%p370) target = $region200
        $region199: #{tpu_custom_call.1} parent=11 // pred_region
          %s373 = sshll.u32 1, 1
          %s374 = ssub.s32 %s373, 1
          loop: start=0, step=1, limit=1
          $region201: #{tpu_custom_call.1} parent=199 // loop_pre_header
            _
          $region202: #{tpu_custom_call.1} parent=199 // loop_header
            %s376 = sphi 0, %s380
            %p377 = scmp.ge.s32.totalorder %s376, 1
            %s381 = sphi %s362, %s362
            %s382 = sphi %s363, %s363
          $region203: #{tpu_custom_call.1} parent=199 // loop_header_branch
            %379 = sbr.rel (%p377) target = $region207
          $region204: #{tpu_custom_call.1} parent=199 // loop_body
            %v383 = vld [vmem:[%s381] sm:%s374]
            %384 = vst [vmem:[%s382] sm:%s374] %v383
          $region205: #{tpu_custom_call.1} parent=199 // loop_footer
            %s380 = sadd.s32 1, %s376
          $region206: #{tpu_custom_call.1} parent=199 // loop_footer_branch
            %375 = sbr.rel target = $region202
          $region207: #{tpu_custom_call.1} parent=199 // loop_exit
            _
        $region200: #{tpu_custom_call.1} parent=11 // pred_fallthru
          _
        // Predicated region
        $region219: #{tpu_custom_call.1} parent=11 // pred_check
          _
        $region220: #{tpu_custom_call.1} parent=11 // pred_check_branch
          %409 = sbr.rel (0) target = $region222
        $region221: #{tpu_custom_call.1} parent=11 // pred_region
          %410 = vsyncadd %s364, 16
        $region222: #{tpu_custom_call.1} parent=11 // pred_fallthru
          _
        %s411 = sadd.s32 %s56, 7
        %s412 = sld [smem:[#allocation5 + %s411]]
        %s413 = scalar_lea.vmem %s2, %s412
        %s414 = scalar_lea.vmem [#allocation2], 7
        %s415 = scalar_lea.sflag [#allocation3], 7
        %p417 = scmp.lt.u32.totalorder 1, 8
        %p418 = pneg %p417
        // Predicated region
        $region223: #{tpu_custom_call.1} parent=11 // pred_check
          _
        $region224: #{tpu_custom_call.1} parent=11 // pred_check_branch
          %420 = sbr.rel (%p417) target = $region226
        $region225: #{tpu_custom_call.1} parent=11 // pred_region
          %s436 = sand.u32 1, 7
          %p437 = scmp.eq.s32.totalorder %s436, 0
          %p438 = pneg %p437
          // Predicated region
          $region238: #{tpu_custom_call.1} parent=225 // pred_check
            _
          $region239: #{tpu_custom_call.1} parent=225 // pred_check_branch
            %440 = sbr.rel (%p437) target = $region241
          $region240: #{tpu_custom_call.1} parent=225 // pred_region
            %s441 = sand.u32 1, 7
            %s442 = ssub.s32 1, %s441
            %s443 = scalar_lea.vmem %s413, %s442
            %s444 = ssub.s32 1, %s441
            %s445 = scalar_lea.vmem %s414, %s444 [#allocation2]
            %s446 = sshll.u32 1, %s441
            %s447 = ssub.s32 %s446, 1
            loop: start=0, step=1, limit=1
            $region242: #{tpu_custom_call.1} parent=240 // loop_pre_header
              _
            $region243: #{tpu_custom_call.1} parent=240 // loop_header
              %s449 = sphi 0, %s453
              %p450 = scmp.ge.s32.totalorder %s449, 1
              %s454 = sphi %s443, %s443
              %s455 = sphi %s445, %s445
            $region244: #{tpu_custom_call.1} parent=240 // loop_header_branch
              %452 = sbr.rel (%p450) target = $region248
            $region245: #{tpu_custom_call.1} parent=240 // loop_body
              %v456 = vld [vmem:[%s454] sm:%s447]
              %457 = vst [vmem:[%s455] sm:%s447] %v456
            $region246: #{tpu_custom_call.1} parent=240 // loop_footer
              %s453 = sadd.s32 1, %s449
            $region247: #{tpu_custom_call.1} parent=240 // loop_footer_branch
              %448 = sbr.rel target = $region243
            $region248: #{tpu_custom_call.1} parent=240 // loop_exit
              _
          $region241: #{tpu_custom_call.1} parent=225 // pred_fallthru
            _
        $region226: #{tpu_custom_call.1} parent=11 // pred_fallthru
          _
        // Predicated region
        $region227: #{tpu_custom_call.1} parent=11 // pred_check
          %p421 = pneg %p417
        $region228: #{tpu_custom_call.1} parent=11 // pred_check_branch
          %423 = sbr.rel (%p421) target = $region230
        $region229: #{tpu_custom_call.1} parent=11 // pred_region
          %s424 = sshll.u32 1, 1
          %s425 = ssub.s32 %s424, 1
          loop: start=0, step=1, limit=1
          $region231: #{tpu_custom_call.1} parent=229 // loop_pre_header
            _
          $region232: #{tpu_custom_call.1} parent=229 // loop_header
            %s427 = sphi 0, %s431
            %p428 = scmp.ge.s32.totalorder %s427, 1
            %s432 = sphi %s413, %s413
            %s433 = sphi %s414, %s414
          $region233: #{tpu_custom_call.1} parent=229 // loop_header_branch
            %430 = sbr.rel (%p428) target = $region237
          $region234: #{tpu_custom_call.1} parent=229 // loop_body
            %v434 = vld [vmem:[%s432] sm:%s425]
            %435 = vst [vmem:[%s433] sm:%s425] %v434
          $region235: #{tpu_custom_call.1} parent=229 // loop_footer
            %s431 = sadd.s32 1, %s427
          $region236: #{tpu_custom_call.1} parent=229 // loop_footer_branch
            %426 = sbr.rel target = $region232
          $region237: #{tpu_custom_call.1} parent=229 // loop_exit
            _
        $region230: #{tpu_custom_call.1} parent=11 // pred_fallthru
          _
        // Predicated region
        $region249: #{tpu_custom_call.1} parent=11 // pred_check
          _
        $region250: #{tpu_custom_call.1} parent=11 // pred_check_branch
          %460 = sbr.rel (0) target = $region252
        $region251: #{tpu_custom_call.1} parent=11 // pred_region
          %461 = vsyncadd %s415, 16
        $region252: #{tpu_custom_call.1} parent=11 // pred_fallthru
          _
        %s462 = smul.u32 1, 1
        %s463 = sshll.u32 %s462, 4
        %464 = dma.done [#allocation3], %s463
        %s465 = sshll.u32 %s462, 4
        %466 = dma.done %s109, %s465
        %s467 = sshll.u32 %s462, 4
        %468 = dma.done %s160, %s467
        %s469 = sshll.u32 %s462, 4
        %470 = dma.done %s211, %s469
        %s471 = sshll.u32 %s462, 4
        %472 = dma.done %s262, %s471
        %s473 = sshll.u32 %s462, 4
        %474 = dma.done %s313, %s473
        %s475 = sshll.u32 %s462, 4
        %476 = dma.done %s364, %s475
        %s477 = sshll.u32 %s462, 4
        %478 = dma.done %s415, %s477
        %v479 = vld [vmem:[#allocation2] sm:$0xff]
        %vm480 = vcmask 261120
        %481 = vst.msk [vmem:[%s55] sm:$0xff] %vm480, %v479
        %s482 = sand.u32 %s28, 1
        %s483 = scalar_lea.sflag [#allocation8], %s482
        %s484 = sand.u32 %s28, 1
        %s485 = smul.addr %s484, 8
        %s486 = scalar_lea.vmem [#allocation7], %s485
        // Predicated region
        $region253: #{tpu_custom_call.1} parent=11 // pred_check
          %p487 = pneg %p34
        $region254: #{tpu_custom_call.1} parent=11 // pred_check_branch
          %489 = sbr.rel (%p487) target = $region256
        $region255: #{tpu_custom_call.1} parent=11 // pred_region
          %s491 = ssub.s32 128, 128
          %492 = vsyncadd %s483, %s491
          %s493 = smul.addr %s19, 128
          %s494 = scalar_lea.hbm %s3, %s493
          %s496 = sshll.u32 %s486, 4
          %s497 = int_to_ptr.vmem [resolvable:$true] %s496
          %499 = dma.vmem_to_hbm [thread:$0]  %s497, 128, %s494, %s483
        $region256: #{tpu_custom_call.1} parent=11 // pred_fallthru
          _
      $region12: #{tpu_custom_call.1} parent=5 // pred_fallthru
        _
      %p500 = scmp.le.s32.totalorder 1, %s19
      // Predicated region
      $region257: #{tpu_custom_call.1} parent=5 // pred_check
        %p501 = pneg %p500
      $region258: #{tpu_custom_call.1} parent=5 // pred_check_branch
        %503 = sbr.rel (%p501) target = $region260
      $region259: #{tpu_custom_call.1} parent=5 // pred_region
        %s504 = ssub.s32 %s19, 1
        // Predicated region
        $region261: #{tpu_custom_call.1} parent=259 // pred_check
          %p505 = pneg %p40
        $region262: #{tpu_custom_call.1} parent=259 // pred_check_branch
          %507 = sbr.rel (%p505) target = $region264
        $region263: #{tpu_custom_call.1} parent=259 // pred_region
          %s508 = sand.u32 %s31, 1
          %s509 = scalar_lea.sflag [#allocation8], %s508
          %s510 = sand.u32 %s31, 1
          %s511 = smul.addr %s510, 8
          %s512 = scalar_lea.vmem [#allocation7], %s511
          %513 = dma.done %s509, 128
        $region264: #{tpu_custom_call.1} parent=259 // pred_fallthru
          _
      $region260: #{tpu_custom_call.1} parent=5 // pred_fallthru
        _
    $region6: #{tpu_custom_call.1} parent=1 // loop_footer
      %s23 = sadd.s32 1, %s19
    $region7: #{tpu_custom_call.1} parent=1 // loop_footer_branch
      %18 = sbr.rel target = $region3
    $region8: #{tpu_custom_call.1} parent=1 // loop_exit
      _
    %514 = vsyncpa [#allocation8], 1
    %s515 = scalar_lea.sflag [#allocation8], 1
    %516 = vsyncpa %s515, 1
  %517 = vsyncmov [#allocation3]
  %s518 = vpop.sfrf %517
  %p519 = scmp.eq.s32.totalorder %s518, 0
  %p520 = pneg %p519
  %522 = shalt.err (%p520)
  %s523 = scalar_lea.sflag [#allocation3], 1
  %524 = vsyncmov %s523
  %s525 = vpop.sfrf %524
  %p526 = scmp.eq.s32.totalorder %s525, 0
  %p527 = pneg %p526
  %529 = shalt.err (%p527)
  %s530 = scalar_lea.sflag [#allocation3], 2
  %531 = vsyncmov %s530
  %s532 = vpop.sfrf %531
  %p533 = scmp.eq.s32.totalorder %s532, 0
  %p534 = pneg %p533
  %536 = shalt.err (%p534)
  %s537 = scalar_lea.sflag [#allocation3], 3
  %538 = vsyncmov %s537
  %s539 = vpop.sfrf %538
  %p540 = scmp.eq.s32.totalorder %s539, 0
  %p541 = pneg %p540
  %543 = shalt.err (%p541)
  %s544 = scalar_lea.sflag [#allocation3], 4
  %545 = vsyncmov %s544
  %s546 = vpop.sfrf %545
  %p547 = scmp.eq.s32.totalorder %s546, 0
  %p548 = pneg %p547
  %550 = shalt.err (%p548)
  %s551 = scalar_lea.sflag [#allocation3], 5
  %552 = vsyncmov %s551
  %s553 = vpop.sfrf %552
  %p554 = scmp.eq.s32.totalorder %s553, 0
  %p555 = pneg %p554
  %557 = shalt.err (%p555)
  %s558 = scalar_lea.sflag [#allocation3], 6
  %559 = vsyncmov %s558
  %s560 = vpop.sfrf %559
  %p561 = scmp.eq.s32.totalorder %s560, 0
  %p562 = pneg %p561
  %564 = shalt.err (%p562)
  %s565 = scalar_lea.sflag [#allocation3], 7
  %566 = vsyncmov %s565
  %s567 = vpop.sfrf %566
  %p568 = scmp.eq.s32.totalorder %s567, 0
  %p569 = pneg %p568
  %571 = shalt.err (%p569)

</llo_original>
